<compile_context>
chip_gen: v7x
topology: tpu7x:2x2x1
jax: 0.10.0
libtpu: 0.0.40
codegen_flags: <defaults>
</compile_context>

<pallas_src>
import functools

import jax
import jax.numpy as jnp
from jax.experimental import pallas as pl
from jax.experimental.pallas import tpu as pltpu


def _round_up(x, m):
    return ((x + m - 1) // m) * m


def _matmul_kernel(qt_ref, x_ref, o_ref, acc_ref):
    # qt_ref: (tm, tk) tile of Q^T            (transpose hoisted to wrapper)
    # x_ref : (tk, tn) tile of the fused batch [x_0 | ... | x_{B-1}]
    # o_ref : (tm, tn) output tile, acc_ref: f32 accumulator scratch
    @pl.when(pl.program_id(2) == 0)
    def _():
        acc_ref[...] = jnp.zeros_like(acc_ref)

    acc_ref[...] += jnp.dot(qt_ref[...], x_ref[...],
                            preferred_element_type=jnp.float32)

    @pl.when(pl.program_id(2) == pl.num_programs(2) - 1)
    def _():
        o_ref[...] = acc_ref[...].astype(o_ref.dtype)


@functools.partial(jax.jit, static_argnames=("tm", "tn", "tk"))
def frmap_forward(weight, x, *, tm=256, tn=256, tk=512):
    """weight: (input_size, output_size); x: (B, input_size, p) -> (B, output_size, p)."""
    # TODO(synk): torch.linalg.qr has no clean Pallas/MXU equivalent (Householder
    # reflections); it only touches the parameter, so it stays in plain JAX.
    q, _ = jnp.linalg.qr(weight.astype(jnp.float32))      # (in, out)

    n_in, out_size = weight.shape
    B, _, p = x.shape

    # Hoist the transpose out of the kernel body.
    qt = q.T                                               # (M, K) = (out, in)
    # Fuse the batch into one lane-dense RHS: (K, N), N = B*p.
    x2d = jnp.transpose(x.astype(jnp.float32), (1, 0, 2)).reshape(n_in, B * p)

    M, K, N = out_size, n_in, B * p

    # (8, 128)-aligned tile sizes, capped so double-buffered VMEM stays small.
    tm = min(tm, _round_up(M, 8))
    tn = min(tn, _round_up(N, 128))
    tk = min(tk, _round_up(K, 128))
    Mp = _round_up(M, tm)
    Np = _round_up(N, tn)
    Kp = _round_up(K, tk)

    qt_p = jnp.pad(qt, ((0, Mp - M), (0, Kp - K)))
    x_p = jnp.pad(x2d, ((0, Kp - K), (0, Np - N)))

    cost = pl.CostEstimate(
        flops=2 * Mp * Np * Kp,
        transcendentals=0,
        bytes_accessed=4 * (Mp * Kp + Kp * Np + Mp * Np),
    )

    out2d = pl.pallas_call(
        _matmul_kernel,
        out_shape=jax.ShapeDtypeStruct((Mp, Np), jnp.float32),
        grid_spec=pltpu.PrefetchScalarGridSpec(
            num_scalar_prefetch=0,
            grid=(Mp // tm, Np // tn, Kp // tk),
            in_specs=[
                pl.BlockSpec((tm, tk), lambda i, j, k: (i, k)),
                pl.BlockSpec((tk, tn), lambda i, j, k: (k, j)),
            ],
            out_specs=pl.BlockSpec((tm, tn), lambda i, j, k: (i, j)),
            scratch_shapes=[pltpu.VMEM((tm, tn), jnp.float32)],
        ),
        compiler_params=pltpu.CompilerParams(
            dimension_semantics=("parallel", "parallel", "arbitrary"),
        ),
        cost_estimate=cost,
    )(qt_p, x_p)

    # (Mp, Np) -> (out, B*p) -> (out, B, p) -> (B, out, p)
    out = out2d[:M, :N].reshape(out_size, B, p).transpose(1, 0, 2)
    return out


if __name__ == "__main__":
    key = jax.random.PRNGKey(0)
    k_w, k_x = jax.random.split(key)

    input_size, output_size = 32, 16
    batch, p = 2, 8

    # nn.Parameter(torch.rand(input_size, output_size) * 2 - 1.0)
    weight = jax.random.uniform(k_w, (input_size, output_size), jnp.float32) * 2.0 - 1.0
    x = jax.random.normal(k_x, (batch, input_size, p), jnp.float32)

    out = frmap_forward(weight, x)
    out = jax.block_until_ready(out)

    # sanity check against plain-JAX reference
    q, _ = jnp.linalg.qr(weight)
    ref = jnp.einsum("io,bip->bop", q, x)
    assert out.shape == (batch, output_size, p)
    assert jnp.allclose(out, ref, atol=1e-4, rtol=1e-4)

    print("KERNEL_OK")
</pallas_src>

<mosaic_0001>
module attributes {stable_mosaic.version = 11 : i64} {
  func.func @_matmul_kernel(%arg0: i32, %arg1: i32, %arg2: i32, %arg3: memref<16x128xf32, #tpu.memory_space<vmem>>, %arg4: memref<128x128xf32, #tpu.memory_space<vmem>>, %arg5: memref<16x128xf32, #tpu.memory_space<vmem>>, %arg6: memref<16x128xf32, #tpu.memory_space<vmem>>) attributes {dimension_semantics = [#tpu.dimension_semantics<parallel>, #tpu.dimension_semantics<parallel>, #tpu.dimension_semantics<arbitrary>], iteration_bounds = array<i64: 1, 1, 1>, scalar_prefetch = 0 : i64, scratch_operands = 1 : i64, tpu.core_type = #tpu.core_type<tc>, window_params = [{transform_indices = @transform_0, window_bounds = array<i64: 16, 128>}, {transform_indices = @transform_1, window_bounds = array<i64: 128, 128>}, {transform_indices = @transform_2, window_bounds = array<i64: 16, 128>}]} {
    %c0_i32 = arith.constant 0 : i32
    %0 = arith.cmpi eq, %arg2, %c0_i32 : i32
    %1 = arith.extui %0 : i1 to i32
    %c0_i32_0 = arith.constant 0 : i32
    %2 = arith.cmpi ne, %1, %c0_i32_0 : i32
    scf.if %2 {
      %cst_10 = arith.constant 0.000000e+00 : f32
      %12 = vector.broadcast %cst_10 : f32 to vector<16x128xf32>
      %c0_11 = arith.constant 0 : index
      %c0_12 = arith.constant 0 : index
      %13 = vector.load %arg6[%c0_11, %c0_12] : memref<16x128xf32, #tpu.memory_space<vmem>>, vector<16x128xf32>
      tpu.vector_store %arg6[%c0_11, %c0_12], %12 {strides = array<i32>} : memref<16x128xf32, #tpu.memory_space<vmem>>, vector<16x128xf32>,
    } else {
    }
    %c0 = arith.constant 0 : index
    %c0_1 = arith.constant 0 : index
    %3 = vector.load %arg6[%c0, %c0_1] : memref<16x128xf32, #tpu.memory_space<vmem>>, vector<16x128xf32>
    %c0_2 = arith.constant 0 : index
    %c0_3 = arith.constant 0 : index
    %4 = vector.load %arg3[%c0_2, %c0_3] : memref<16x128xf32, #tpu.memory_space<vmem>>, vector<16x128xf32>
    %c0_4 = arith.constant 0 : index
    %c0_5 = arith.constant 0 : index
    %5 = vector.load %arg4[%c0_4, %c0_5] : memref<128x128xf32, #tpu.memory_space<vmem>>, vector<128x128xf32>
    %cst = arith.constant dense<0.000000e+00> : vector<16x128xf32>
    %6 = tpu.matmul %4, %5, %cst {dimension_numbers = #tpu.dot_dimension_numbers<[1], [0], [0], [1], [0, 0, 1, 1], [], []>} : vector<16x128xf32>, vector<128x128xf32>, vector<16x128xf32> -> vector<16x128xf32>
    %7 = arith.addf %3, %6 : vector<16x128xf32>
    %c0_6 = arith.constant 0 : index
    %c0_7 = arith.constant 0 : index
    %8 = vector.load %arg6[%c0_6, %c0_7] : memref<16x128xf32, #tpu.memory_space<vmem>>, vector<16x128xf32>
    tpu.vector_store %arg6[%c0_6, %c0_7], %7 {strides = array<i32>} : memref<16x128xf32, #tpu.memory_space<vmem>>, vector<16x128xf32>,
    %c0_i32_8 = arith.constant 0 : i32
    %9 = arith.cmpi eq, %arg2, %c0_i32_8 : i32
    %10 = arith.extui %9 : i1 to i32
    %c0_i32_9 = arith.constant 0 : i32
    %11 = arith.cmpi ne, %10, %c0_i32_9 : i32
    scf.if %11 {
      %c0_10 = arith.constant 0 : index
      %c0_11 = arith.constant 0 : index
      %12 = vector.load %arg6[%c0_10, %c0_11] : memref<16x128xf32, #tpu.memory_space<vmem>>, vector<16x128xf32>
      %c0_12 = arith.constant 0 : index
      %c0_13 = arith.constant 0 : index
      %13 = vector.load %arg5[%c0_12, %c0_13] : memref<16x128xf32, #tpu.memory_space<vmem>>, vector<16x128xf32>
      tpu.vector_store %arg5[%c0_12, %c0_13], %12 {strides = array<i32>} : memref<16x128xf32, #tpu.memory_space<vmem>>, vector<16x128xf32>,
    } else {
    }
    return
  }
  func.func @transform_0(%arg0: i32, %arg1: i32, %arg2: i32) -> (i32, i32) {
    %c0_i32 = arith.constant 0 : i32
    return %arg0, %arg2 : i32, i32
  }
  func.func @transform_1(%arg0: i32, %arg1: i32, %arg2: i32) -> (i32, i32) {
    %c0_i32 = arith.constant 0 : i32
    return %arg2, %arg1 : i32, i32
  }
  func.func @transform_2(%arg0: i32, %arg1: i32, %arg2: i32) -> (i32, i32) {
    %c0_i32 = arith.constant 0 : i32
    return %arg0, %arg1 : i32, i32
  }
}

</mosaic_0001>

<llo_original>
// kernel: custom-call.6
$region0: #{custom-call.6}
  %s0 = inlined_call_operand.vmem [shape: f32[32,16], index: 0, kind: input, shape index: {}]
  %s1 = inlined_call_operand.vmem [shape: f32[32,16], index: 1, kind: output, shape index: {0}]
  %s2 = inlined_call_operand.vmem [shape: f32[16], index: 2, kind: output, shape index: {1}]
  %3 = xla_tuple %s1, %s2
  $region1: #{custom-call.6} parent=0
    #allocation0 [shape = 'u8[16384]{0}', space=vmem, size = 0x4000, scoped, tag = 'operand span for operand 0']
    #allocation1 [shape = 'u8[16384]{0}', space=vmem, size = 0x4000, scoped, tag = 'operand span for operand 1']
    #allocation2 [shape = 'u8[4096]{0}', space=vmem, size = 0x1000, scoped, tag = 'operand span for operand 2']
    #allocation3 [shape = 'u8[512]{0}', space=vmem, size = 0x400, scoped, tag = 'packed  for operand 2']
    #allocation4 [shape = 'f32[32,128]{1,0}', space=vmem, size = 0x4000, scoped, tag = 'scratch for Householder reflectors']
    // Predicated region
    $region2: #{custom-call.6} parent=1 // pred_check
      _
    $region3: #{custom-call.6} parent=1 // pred_check_branch
      %5 = sbr.rel (0) target = $region5
    $region4: #{custom-call.6} parent=1 // pred_region
      // Predicated region
      $region6: #{custom-call.6} parent=4 // pred_check
        _
      $region7: #{custom-call.6} parent=4 // pred_check_branch
        %7 = sbr.rel (0) target = $region9
      $region8: #{custom-call.6} parent=4 // pred_region
        // Predicated region
        $region21: #{custom-call.6} parent=8 // pred_check
          _
        $region22: #{custom-call.6} parent=8 // pred_check_branch
          %28 = sbr.rel (0) target = $region24
        $region23: #{custom-call.6} parent=8 // pred_region
          loop: start=0, step=1, limit=1
          $region25: #{custom-call.6} parent=23 // loop_pre_header
            _
          $region26: #{custom-call.6} parent=23 // loop_header
            %s30 = sphi 0, %s34
            %p31 = scmp.ge.s32.totalorder %s30, 1
            %s35 = sphi %s0, %s0
            %s36 = sphi [#allocation0], [#allocation0]
          $region27: #{custom-call.6} parent=23 // loop_header_branch
            %33 = sbr.rel (%p31) target = $region31
          $region28: #{custom-call.6} parent=23 // loop_body
            %v37 = vld [vmem:[%s35] sm:$0xff]
            %38 = vst [vmem:[%s36] sm:$0xff] %v37
            %v39 = vld [vmem:[%s35 + $0x8] sm:$0xff]
            %40 = vst [vmem:[%s36 + $0x8] sm:$0xff] %v39
            %v41 = vld [vmem:[%s35 + $0x10] sm:$0xff]
            %42 = vst [vmem:[%s36 + $0x10] sm:$0xff] %v41
            %v43 = vld [vmem:[%s35 + $0x18] sm:$0xff]
            %44 = vst [vmem:[%s36 + $0x18] sm:$0xff] %v43
          $region29: #{custom-call.6} parent=23 // loop_footer
            %s34 = sadd.s32 1, %s30
          $region30: #{custom-call.6} parent=23 // loop_footer_branch
            %29 = sbr.rel target = $region26
          $region31: #{custom-call.6} parent=23 // loop_exit
            _
        $region24: #{custom-call.6} parent=8 // pred_fallthru
          _
        // Predicated region
        $region32: #{custom-call.6} parent=8 // pred_check
          _
        $region33: #{custom-call.6} parent=8 // pred_check_branch
          %46 = sbr.rel target = $region35
        $region34: #{custom-call.6} parent=8 // pred_region
          _
        $region35: #{custom-call.6} parent=8 // pred_fallthru
          _
      $region9: #{custom-call.6} parent=4 // pred_fallthru
        _
      // Predicated region
      $region10: #{custom-call.6} parent=4 // pred_check
        _
      $region11: #{custom-call.6} parent=4 // pred_check_branch
        %9 = sbr.rel target = $region13
      $region12: #{custom-call.6} parent=4 // pred_region
        loop: start=0, step=1, limit=1
        $region14: #{custom-call.6} parent=12 // loop_pre_header
          _
        $region15: #{custom-call.6} parent=12 // loop_header
          %s12 = sphi 0, %s16
          %p13 = scmp.ge.s32.totalorder %s12, 1
          %s17 = sphi %s0, %s0
          %s18 = sphi [#allocation0], [#allocation0]
        $region16: #{custom-call.6} parent=12 // loop_header_branch
          %15 = sbr.rel (%p13) target = $region20
        $region17: #{custom-call.6} parent=12 // loop_body
          %v19 = vld [vmem:[%s17] sm:$0xff]
          %20 = vst [vmem:[%s18] sm:$0xff] %v19
          %v21 = vld [vmem:[%s17 + $0x8] sm:$0xff]
          %22 = vst [vmem:[%s18 + $0x8] sm:$0xff] %v21
          %v23 = vld [vmem:[%s17 + $0x10] sm:$0xff]
          %24 = vst [vmem:[%s18 + $0x10] sm:$0xff] %v23
          %v25 = vld [vmem:[%s17 + $0x18] sm:$0xff]
          %26 = vst [vmem:[%s18 + $0x18] sm:$0xff] %v25
        $region18: #{custom-call.6} parent=12 // loop_footer
          %s16 = sadd.s32 1, %s12
        $region19: #{custom-call.6} parent=12 // loop_footer_branch
          %11 = sbr.rel target = $region15
        $region20: #{custom-call.6} parent=12 // loop_exit
          _
      $region13: #{custom-call.6} parent=4 // pred_fallthru
        _
    $region5: #{custom-call.6} parent=1 // pred_fallthru
      _
    %47 = vnop
    %v48 = vld [vmem:[#allocation0] sm:$0xff]
    %49 = vst [vmem:[#allocation1] sm:$0xff] %v48
    %s50 = scalar_lea.vmem [#allocation1], 8
    %s51 = scalar_lea.vmem [#allocation0], 8
    %v52 = vld [vmem:[%s51] sm:$0xff]
    %53 = vst [vmem:[%s50] sm:$0xff] %v52
    %s54 = scalar_lea.vmem [#allocation1], 16
    %s55 = scalar_lea.vmem [#allocation0], 16
    %v56 = vld [vmem:[%s55] sm:$0xff]
    %57 = vst [vmem:[%s54] sm:$0xff] %v56
    %s58 = scalar_lea.vmem [#allocation1], 24
    %s59 = scalar_lea.vmem [#allocation0], 24
    %v60 = vld [vmem:[%s59] sm:$0xff]
    %61 = vst [vmem:[%s58] sm:$0xff] %v60
    %62 = vst [vmem:[#allocation2] sm:$0x1] 0.0
    loop: start=0, step=1, limit=16
    $region36: #{custom-call.6} parent=1 // loop_pre_header
      _
    $region37: #{custom-call.6} parent=1 // loop_header
      %s64 = sphi 0, %s68
      %p65 = scmp.ge.s32.totalorder %s64, 16
    $region38: #{custom-call.6} parent=1 // loop_header_branch
      %67 = sbr.rel (%p65) target = $region42
    $region39: #{custom-call.6} parent=1 // loop_body
      %v69 = vld [vmem:[#allocation1] sm:$0xff]
      %v70 = vlaneseq
      %v71 = vshrl.u32 %v70, 7
      %v73 = vstv %s64
      %vm74 = vcmp.gt.s32.totalorder %v71, %v73
      %v75 = vsel %vm74, %v69, 0.0
      %v76 = vmul.f32 %v75, %v75
      %s77 = scalar_lea.vmem [#allocation1], 8
      %v78 = vld [vmem:[%s77] sm:$0xff]
      %v79 = vlaneseq
      %v80 = vshrl.u32 %v79, 7
      %v81 = vadd.s32 %v80, 8
      %v82 = vstv %s64
      %vm83 = vcmp.gt.s32.totalorder %v81, %v82
      %v84 = vsel %vm83, %v78, 0.0
      %v85 = vmul.f32 %v84, %v84
      %v86 = vadd.f32 %v76, %v85
      %s87 = scalar_lea.vmem [#allocation1], 16
      %v88 = vld [vmem:[%s87] sm:$0xff]
      %v89 = vlaneseq
      %v90 = vshrl.u32 %v89, 7
      %v91 = vadd.s32 %v90, 16
      %v92 = vstv %s64
      %vm93 = vcmp.gt.s32.totalorder %v91, %v92
      %v94 = vsel %vm93, %v88, 0.0
      %v95 = vmul.f32 %v94, %v94
      %v96 = vadd.f32 %v86, %v95
      %s97 = scalar_lea.vmem [#allocation1], 24
      %v98 = vld [vmem:[%s97] sm:$0xff]
      %v99 = vlaneseq
      %v100 = vshrl.u32 %v99, 7
      %v101 = vadd.s32 %v100, 24
      %v102 = vstv %s64
      %vm103 = vcmp.gt.s32.totalorder %v101, %v102
      %vm104 = vcmp.lt.s32.totalorder %v101, 32
      %vm105 = vmand %vm103, %vm104
      %v106 = vsel %vm105, %v98, 0.0
      %v107 = vmul.f32 %v106, %v106
      %v108 = vadd.f32 %v96, %v107
      %v109 = vrot.slane %v108, 4
      %v110 = vadd.f32 %v108, %v109
      %v111 = vrot.slane %v110, 2
      %v112 = vadd.f32 %v110, %v111
      %v113 = vrot.slane %v112, 1
      %v114 = vadd.f32 %v112, %v113
      %v115 = vrsqrt.pop %v114
      %v116 = vmul.f32 %v114, %v115
      %vm117 = vcmp.eq.f32.partialorder %v114, inf
      %v118 = vsel %vm117, %v114, %v116
      %vm119 = vcmp.eq.f32.partialorder %v114, 0.0
      %v120 = vand.u32 %v114, 2147483648
      %v121 = vsel %vm119, %v120, %v118
      %vm122 = vcmp.eq.f32.partialorder %v114, 0.0
      %s123 = sshrl.u32 %s64, 3
      %s124 = sand.u32 %s64, 7
      %s125 = smul.addr %s123, 8
      %s126 = sadd.s32 %s124, %s125
      %s127 = scalar_lea.vmem [#allocation1], %s126
      %v128 = vld [vmem:[%s127] ss:$0 sm:$0xff]
      %v129 = vand.u32 2147483647, %v128
      %v130 = vmax.f32 %v129, 0.0
      %v131 = vand.u32 2147483647, %v121
      %v132 = vmax.f32 %v130, %v131
      %v133 = vrcp.pop %v132
      %v134 = vmul.f32 %v129, %v133
      %v135 = vmul.f32 %v134, %v134
      %v136 = vrcp.pop %v132
      %v137 = vmul.f32 0.0, %v136
      %v138 = vmul.f32 %v137, %v137
      %v139 = vadd.f32 %v135, %v138
      %v140 = vrcp.pop %v132
      %v141 = vmul.f32 %v131, %v140
      %v142 = vmul.f32 %v141, %v141
      %v143 = vadd.f32 %v139, %v142
      %vm144 = vcmp.eq.f32.partialorder %v132, 0.0
      %v145 = vrsqrt.pop %v143
      %v146 = vmul.f32 %v143, %v145
      %vm147 = vcmp.eq.f32.partialorder %v143, inf
      %v148 = vsel %vm147, %v143, %v146
      %vm149 = vcmp.eq.f32.partialorder %v143, 0.0
      %v150 = vand.u32 %v143, 2147483648
      %v151 = vsel %vm149, %v150, %v148
      %v152 = vmul.f32 %v132, %v151
      %v153 = vsel %vm144, 0.0, %v152
      %vm154 = vcmp.lt.f32.partialorder %v128, 0.0
      %v155 = vxor.u32 %v153, 2147483648
      %v156 = vsel %vm154, %v153, %v155
      %v157 = vsub.f32 %v156, %v128
      %v158 = vrcp.pop %v156
      %v159 = vmul.f32 %v157, %v158
      %v160 = vsel %vm122, %v128, %v156
      %v161 = vsel %vm122, 0.0, %v159
      %v162 = vsub.f32 %v128, %v160
      %s163 = smov [#allocation1]
      %v164 = vlaneseq
      %v165 = vshrl.u32 %v164, 7
      %v166 = vmov %v165
      %v167 = vld [vmem:[%s163] sm:$0xff]
      %v169 = vstv %s64
      %vm170 = vcmp.gt.s32.totalorder %v166, %v169
      %v171 = vsel %vm170, %v167, 0.0
      %v172 = vrcp.pop %v162
      %v173 = vmul.f32 %v171, %v172
      %v174 = vsel %vm122, 0.0, %v173
      %v175 = vstv %s64
      %v176 = vlaneseq
      %v177 = vand.u32 %v176, 127
      %vm178 = vcmp.eq.s32.totalorder %v177, %v175
      %v179 = vsel %vm178, %v174, 0.0
      %180 = vadd.xlane.f32.xlu0 %v179
      %v181 = vpop.xlane.xlu0 %180
      %182 = vst [vmem:[#allocation4] sm:$0xff] %v181
      %s183 = scalar_lea.vmem %s163, 8
      %v184 = vld [vmem:[%s183] sm:$0xff]
      %v185 = vadd.s32 %v166, 8
      %v186 = vstv %s64
      %vm187 = vcmp.gt.s32.totalorder %v185, %v186
      %v188 = vsel %vm187, %v184, 0.0
      %v189 = vrcp.pop %v162
      %v190 = vmul.f32 %v188, %v189
      %v191 = vsel %vm122, 0.0, %v190
      %v192 = vstv %s64
      %v193 = vlaneseq
      %v194 = vand.u32 %v193, 127
      %vm195 = vcmp.eq.s32.totalorder %v194, %v192
      %v196 = vsel %vm195, %v191, 0.0
      %197 = vadd.xlane.f32.xlu0 %v196
      %v198 = vpop.xlane.xlu0 %197
      %s199 = scalar_lea.vmem [#allocation4], 8
      %200 = vst [vmem:[%s199] sm:$0xff] %v198
      %s201 = scalar_lea.vmem %s163, 16
      %v202 = vld [vmem:[%s201] sm:$0xff]
      %v203 = vadd.s32 %v166, 16
      %v204 = vstv %s64
      %vm205 = vcmp.gt.s32.totalorder %v203, %v204
      %v206 = vsel %vm205, %v202, 0.0
      %v207 = vrcp.pop %v162
      %v208 = vmul.f32 %v206, %v207
      %v209 = vsel %vm122, 0.0, %v208
      %v210 = vstv %s64
      %v211 = vlaneseq
      %v212 = vand.u32 %v211, 127
      %vm213 = vcmp.eq.s32.totalorder %v212, %v210
      %v214 = vsel %vm213, %v209, 0.0
      %215 = vadd.xlane.f32.xlu0 %v214
      %v216 = vpop.xlane.xlu0 %215
      %s217 = scalar_lea.vmem [#allocation4], 16
      %218 = vst [vmem:[%s217] sm:$0xff] %v216
      %s219 = scalar_lea.vmem %s163, 24
      %v220 = vld [vmem:[%s219] sm:$0xff]
      %v221 = vadd.s32 %v166, 24
      %v222 = vstv %s64
      %vm223 = vcmp.gt.s32.totalorder %v221, %v222
      %vm224 = vcmp.lt.s32.totalorder %v221, 32
      %vm225 = vmand %vm223, %vm224
      %v226 = vsel %vm225, %v220, 0.0
      %v227 = vrcp.pop %v162
      %v228 = vmul.f32 %v226, %v227
      %v229 = vsel %vm122, 0.0, %v228
      %v230 = vstv %s64
      %v231 = vlaneseq
      %v232 = vand.u32 %v231, 127
      %vm233 = vcmp.eq.s32.totalorder %v232, %v230
      %v234 = vsel %vm233, %v229, 0.0
      %235 = vadd.xlane.f32.xlu0 %v234
      %v236 = vpop.xlane.xlu0 %235
      %s237 = scalar_lea.vmem [#allocation4], 24
      %238 = vst [vmem:[%s237] sm:$0xff] %v236
      %s239 = scalar_lea.vmem [#allocation4], %s64
      %240 = vst [vmem:[%s239] sm:$0x1] 1.0
      %v241 = vstv %s64
      %v242 = vlaneseq
      %v243 = vand.u32 %v242, 127
      %vm244 = vcmp.eq.s32.totalorder %v243, %v241
      %v245 = vsel %vm244, %v161, 0.0
      %246 = vadd.xlane.f32.xlu0 %v245
      %v247 = vpop.xlane.xlu0 %246
      %v248 = vstv %s64
      %v249 = vlaneseq
      %v250 = vand.u32 %v249, 127
      %vm251 = vcmp.eq.s32.totalorder %v250, %v248
      %v252 = vld [vmem:[#allocation2] ss:$0 sm:$0xff]
      %v253 = vsel %vm251, %v247, %v252
      %254 = vst [vmem:[#allocation2] sm:$0x1] %v253
      %s255 = smov [#allocation1]
      %s256 = smov [#allocation4]
      %v257 = vlaneseq
      %v258 = vshrl.u32 %v257, 7
      %v259 = vmov %v258
      %v261 = vld [vmem:[%s256] sm:$0xff]
      %v262 = vld [vmem:[%s255] sm:$0xff]
      %v263 = vmul.f32 %v261, %v262
      %v264 = vadd.s32 %v259, 8
      %s265 = scalar_lea.vmem %s256, 8
      %v266 = vld [vmem:[%s265] sm:$0xff]
      %s267 = scalar_lea.vmem %s255, 8
      %v268 = vld [vmem:[%s267] sm:$0xff]
      %v269 = vmul.f32 %v266, %v268
      %v270 = vadd.f32 %v263, %v269
      %v271 = vadd.s32 %v259, 16
      %s272 = scalar_lea.vmem %s256, 16
      %v273 = vld [vmem:[%s272] sm:$0xff]
      %s274 = scalar_lea.vmem %s255, 16
      %v275 = vld [vmem:[%s274] sm:$0xff]
      %v276 = vmul.f32 %v273, %v275
      %v277 = vadd.f32 %v270, %v276
      %v278 = vadd.s32 %v259, 24
      %s279 = scalar_lea.vmem %s256, 24
      %v280 = vld [vmem:[%s279] sm:$0xff]
      %s281 = scalar_lea.vmem %s255, 24
      %v282 = vld [vmem:[%s281] sm:$0xff]
      %v283 = vmul.f32 %v280, %v282
      %vm284 = vcmp.lt.s32.totalorder %v278, 32
      %v285 = vsel %vm284, %v283, 0.0
      %v286 = vadd.f32 %v277, %v285
      %v287 = vrot.slane %v286, 4
      %v288 = vadd.f32 %v286, %v287
      %v289 = vrot.slane %v288, 2
      %v290 = vadd.f32 %v288, %v289
      %v291 = vrot.slane %v290, 1
      %v292 = vadd.f32 %v290, %v291
      %s293 = smov %s255
      %s294 = smov %s256
      %v295 = vlaneseq
      %v296 = vshrl.u32 %v295, 7
      %v297 = vmov %v296
      %v298 = vmul.f32 %v292, %v247
      %v300 = vlaneseq
      %v301 = vand.u32 %v300, 127
      %v302 = vld [vmem:[%s294] sm:$0xff]
      %v303 = vmul.f32 %v302, %v298
      %v304 = vld [vmem:[%s293] sm:$0xff]
      %v305 = vstv %s64
      %vm306 = vcmp.gt.s32.totalorder %v301, %v305
      %v307 = vsub.f32 %v304, %v303
      %v308 = vsel %vm306, %v307, %v304
      %v309 = vstv %s64
      %v310 = vlaneseq
      %v311 = vand.u32 %v310, 127
      %vm312 = vcmp.eq.s32.totalorder %v311, %v309
      %v313 = vstv %s64
      %vm314 = vcmp.ge.s32.totalorder %v297, %v313
      %vm315 = vmand %vm312, %vm314
      %v316 = vsel %vm315, %v302, %v308
      %317 = vst [vmem:[%s293] sm:$0xff] %v316
      %v318 = vadd.s32 %v297, 8
      %v319 = vlaneseq
      %v320 = vand.u32 %v319, 127
      %s321 = scalar_lea.vmem %s294, 8
      %v322 = vld [vmem:[%s321] sm:$0xff]
      %v323 = vmul.f32 %v322, %v298
      %s324 = scalar_lea.vmem %s293, 8
      %v325 = vld [vmem:[%s324] sm:$0xff]
      %v326 = vstv %s64
      %vm327 = vcmp.gt.s32.totalorder %v320, %v326
      %v328 = vsub.f32 %v325, %v323
      %v329 = vsel %vm327, %v328, %v325
      %v330 = vstv %s64
      %v331 = vlaneseq
      %v332 = vand.u32 %v331, 127
      %vm333 = vcmp.eq.s32.totalorder %v332, %v330
      %v334 = vstv %s64
      %vm335 = vcmp.ge.s32.totalorder %v318, %v334
      %vm336 = vmand %vm333, %vm335
      %v337 = vsel %vm336, %v322, %v329
      %338 = vst [vmem:[%s324] sm:$0xff] %v337
      %v339 = vadd.s32 %v297, 16
      %v340 = vlaneseq
      %v341 = vand.u32 %v340, 127
      %s342 = scalar_lea.vmem %s294, 16
      %v343 = vld [vmem:[%s342] sm:$0xff]
      %v344 = vmul.f32 %v343, %v298
      %s345 = scalar_lea.vmem %s293, 16
      %v346 = vld [vmem:[%s345] sm:$0xff]
      %v347 = vstv %s64
      %vm348 = vcmp.gt.s32.totalorder %v341, %v347
      %v349 = vsub.f32 %v346, %v344
      %v350 = vsel %vm348, %v349, %v346
      %v351 = vstv %s64
      %v352 = vlaneseq
      %v353 = vand.u32 %v352, 127
      %vm354 = vcmp.eq.s32.totalorder %v353, %v351
      %v355 = vstv %s64
      %vm356 = vcmp.ge.s32.totalorder %v339, %v355
      %vm357 = vmand %vm354, %vm356
      %v358 = vsel %vm357, %v343, %v350
      %359 = vst [vmem:[%s345] sm:$0xff] %v358
      %v360 = vadd.s32 %v297, 24
      %v361 = vlaneseq
      %v362 = vand.u32 %v361, 127
      %s363 = scalar_lea.vmem %s294, 24
      %v364 = vld [vmem:[%s363] sm:$0xff]
      %v365 = vmul.f32 %v364, %v298
      %s366 = scalar_lea.vmem %s293, 24
      %v367 = vld [vmem:[%s366] sm:$0xff]
      %v368 = vstv %s64
      %vm369 = vcmp.gt.s32.totalorder %v362, %v368
      %v370 = vsub.f32 %v367, %v365
      %v371 = vsel %vm369, %v370, %v367
      %v372 = vstv %s64
      %v373 = vlaneseq
      %v374 = vand.u32 %v373, 127
      %vm375 = vcmp.eq.s32.totalorder %v374, %v372
      %v376 = vstv %s64
      %vm377 = vcmp.ge.s32.totalorder %v360, %v376
      %vm378 = vmand %vm375, %vm377
      %v379 = vsel %vm378, %v364, %v371
      %380 = vst [vmem:[%s366] sm:$0xff] %v379
      %s381 = scalar_lea.vmem %s293, %s64
      %v382 = vld [vmem:[%s381] ss:$0 sm:$0xff]
      %v383 = vstv %s64
      %v384 = vlaneseq
      %v385 = vand.u32 %v384, 127
      %vm386 = vcmp.eq.s32.totalorder %v385, %v383
      %v387 = vsel %vm386, %v160, %v382
      %388 = vst [vmem:[%s381] sm:$0x1] %v387
    $region40: #{custom-call.6} parent=1 // loop_footer
      %s68 = sadd.s32 1, %s64
    $region41: #{custom-call.6} parent=1 // loop_footer_branch
      %63 = sbr.rel target = $region37
    $region42: #{custom-call.6} parent=1 // loop_exit
      _
    %s390 = sshllo.u32 0, 1
    %v392 = vld [vmem:[#allocation2] sm:%s390]
    %s393 = sshllo.u32 0, 1
    %394 = vst [vmem:[#allocation3] sm:%s393] %v392
    // Predicated region
    $region43: #{custom-call.6} parent=1 // pred_check
      _
    $region44: #{custom-call.6} parent=1 // pred_check_branch
      %396 = sbr.rel (0) target = $region46
    $region45: #{custom-call.6} parent=1 // pred_region
      // Predicated region
      $region47: #{custom-call.6} parent=45 // pred_check
        _
      $region48: #{custom-call.6} parent=45 // pred_check_branch
        %398 = sbr.rel (0) target = $region50
      $region49: #{custom-call.6} parent=45 // pred_region
        // Predicated region
        $region62: #{custom-call.6} parent=49 // pred_check
          _
        $region63: #{custom-call.6} parent=49 // pred_check_branch
          %419 = sbr.rel (0) target = $region65
        $region64: #{custom-call.6} parent=49 // pred_region
          loop: start=0, step=1, limit=1
          $region66: #{custom-call.6} parent=64 // loop_pre_header
            _
          $region67: #{custom-call.6} parent=64 // loop_header
            %s421 = sphi 0, %s425
            %p422 = scmp.ge.s32.totalorder %s421, 1
            %s426 = sphi [#allocation1], [#allocation1]
            %s427 = sphi %s1, %s1
          $region68: #{custom-call.6} parent=64 // loop_header_branch
            %424 = sbr.rel (%p422) target = $region72
          $region69: #{custom-call.6} parent=64 // loop_body
            %v428 = vld [vmem:[%s426] sm:$0xff]
            %429 = vst [vmem:[%s427] sm:$0xff] %v428
            %v430 = vld [vmem:[%s426 + $0x8] sm:$0xff]
            %431 = vst [vmem:[%s427 + $0x8] sm:$0xff] %v430
            %v432 = vld [vmem:[%s426 + $0x10] sm:$0xff]
            %433 = vst [vmem:[%s427 + $0x10] sm:$0xff] %v432
            %v434 = vld [vmem:[%s426 + $0x18] sm:$0xff]
            %435 = vst [vmem:[%s427 + $0x18] sm:$0xff] %v434
          $region70: #{custom-call.6} parent=64 // loop_footer
            %s425 = sadd.s32 1, %s421
          $region71: #{custom-call.6} parent=64 // loop_footer_branch
            %420 = sbr.rel target = $region67
          $region72: #{custom-call.6} parent=64 // loop_exit
            _
        $region65: #{custom-call.6} parent=49 // pred_fallthru
          _
        // Predicated region
        $region73: #{custom-call.6} parent=49 // pred_check
          _
        $region74: #{custom-call.6} parent=49 // pred_check_branch
          %437 = sbr.rel target = $region76
        $region75: #{custom-call.6} parent=49 // pred_region
          _
        $region76: #{custom-call.6} parent=49 // pred_fallthru
          _
      $region50: #{custom-call.6} parent=45 // pred_fallthru
        _
      // Predicated region
      $region51: #{custom-call.6} parent=45 // pred_check
        _
      $region52: #{custom-call.6} parent=45 // pred_check_branch
        %400 = sbr.rel target = $region54
      $region53: #{custom-call.6} parent=45 // pred_region
        loop: start=0, step=1, limit=1
        $region55: #{custom-call.6} parent=53 // loop_pre_header
          _
        $region56: #{custom-call.6} parent=53 // loop_header
          %s403 = sphi 0, %s407
          %p404 = scmp.ge.s32.totalorder %s403, 1
          %s408 = sphi [#allocation1], [#allocation1]
          %s409 = sphi %s1, %s1
        $region57: #{custom-call.6} parent=53 // loop_header_branch
          %406 = sbr.rel (%p404) target = $region61
        $region58: #{custom-call.6} parent=53 // loop_body
          %v410 = vld [vmem:[%s408] sm:$0xff]
          %411 = vst [vmem:[%s409] sm:$0xff] %v410
          %v412 = vld [vmem:[%s408 + $0x8] sm:$0xff]
          %413 = vst [vmem:[%s409 + $0x8] sm:$0xff] %v412
          %v414 = vld [vmem:[%s408 + $0x10] sm:$0xff]
          %415 = vst [vmem:[%s409 + $0x10] sm:$0xff] %v414
          %v416 = vld [vmem:[%s408 + $0x18] sm:$0xff]
          %417 = vst [vmem:[%s409 + $0x18] sm:$0xff] %v416
        $region59: #{custom-call.6} parent=53 // loop_footer
          %s407 = sadd.s32 1, %s403
        $region60: #{custom-call.6} parent=53 // loop_footer_branch
          %402 = sbr.rel target = $region56
        $region61: #{custom-call.6} parent=53 // loop_exit
          _
      $region54: #{custom-call.6} parent=45 // pred_fallthru
        _
    $region46: #{custom-call.6} parent=1 // pred_fallthru
      _
    %438 = vnop
    // Predicated region
    $region77: #{custom-call.6} parent=1 // pred_check
      _
    $region78: #{custom-call.6} parent=1 // pred_check_branch
      %440 = sbr.rel (0) target = $region80
    $region79: #{custom-call.6} parent=1 // pred_region
      // Predicated region
      $region81: #{custom-call.6} parent=79 // pred_check
        _
      $region82: #{custom-call.6} parent=79 // pred_check_branch
        %442 = sbr.rel (0) target = $region84
      $region83: #{custom-call.6} parent=79 // pred_region
        // Predicated region
        $region85: #{custom-call.6} parent=83 // pred_check
          _
        $region86: #{custom-call.6} parent=83 // pred_check_branch
          %444 = sbr.rel target = $region88
        $region87: #{custom-call.6} parent=83 // pred_region
          // Predicated region
          $region100: #{custom-call.6} parent=87 // pred_check
            _
          $region101: #{custom-call.6} parent=87 // pred_check_branch
            %459 = sbr.rel (0) target = $region103
          $region102: #{custom-call.6} parent=87 // pred_region
            loop: start=0, step=1, limit=1
            $region104: #{custom-call.6} parent=102 // loop_pre_header
              _
            $region105: #{custom-call.6} parent=102 // loop_header
              %s462 = sphi 0, %s466
              %p463 = scmp.ge.s32.totalorder %s462, 1
              %s467 = sphi [#allocation3], [#allocation3]
              %s468 = sphi %s2, %s2
            $region106: #{custom-call.6} parent=102 // loop_header_branch
              %465 = sbr.rel (%p463) target = $region110
            $region107: #{custom-call.6} parent=102 // loop_body
              %v469 = vld [vmem:[%s467] sm:$0x1]
              %470 = vst [vmem:[%s468] sm:$0x1] %v469
            $region108: #{custom-call.6} parent=102 // loop_footer
              %s466 = sadd.s32 1, %s462
            $region109: #{custom-call.6} parent=102 // loop_footer_branch
              %461 = sbr.rel target = $region105
            $region110: #{custom-call.6} parent=102 // loop_exit
              _
          $region103: #{custom-call.6} parent=87 // pred_fallthru
            _
        $region88: #{custom-call.6} parent=83 // pred_fallthru
          _
        // Predicated region
        $region89: #{custom-call.6} parent=83 // pred_check
          _
        $region90: #{custom-call.6} parent=83 // pred_check_branch
          %446 = sbr.rel (0) target = $region92
        $region91: #{custom-call.6} parent=83 // pred_region
          loop: start=0, step=1, limit=1
          $region93: #{custom-call.6} parent=91 // loop_pre_header
            _
          $region94: #{custom-call.6} parent=91 // loop_header
            %s449 = sphi 0, %s453
            %p450 = scmp.ge.s32.totalorder %s449, 1
            %s454 = sphi [#allocation3], [#allocation3]
            %s455 = sphi %s2, %s2
          $region95: #{custom-call.6} parent=91 // loop_header_branch
            %452 = sbr.rel (%p450) target = $region99
          $region96: #{custom-call.6} parent=91 // loop_body
            %v456 = vld [vmem:[%s454] sm:$0x1]
            %457 = vst [vmem:[%s455] sm:$0x1] %v456
          $region97: #{custom-call.6} parent=91 // loop_footer
            %s453 = sadd.s32 1, %s449
          $region98: #{custom-call.6} parent=91 // loop_footer_branch
            %448 = sbr.rel target = $region94
          $region99: #{custom-call.6} parent=91 // loop_exit
            _
        $region92: #{custom-call.6} parent=83 // pred_fallthru
          _
      $region84: #{custom-call.6} parent=79 // pred_fallthru
        _
      %471 = vnop
    $region80: #{custom-call.6} parent=1 // pred_fallthru
      _
    // Predicated region
    $region111: #{custom-call.6} parent=1 // pred_check
      _
    $region112: #{custom-call.6} parent=1 // pred_check_branch
      %473 = sbr.rel (0) target = $region114
    $region113: #{custom-call.6} parent=1 // pred_region
      _
    $region114: #{custom-call.6} parent=1 // pred_fallthru
      _

// kernel: custom-call.8
$region0: #{custom-call.8}
  %s0 = inlined_call_operand.vmem [shape: f32[16,16], index: 0, kind: input, shape index: {}]
  %s1 = inlined_call_operand.vmem [shape: f32[16,16], index: 1, kind: output, shape index: {}]
  $region1: #{custom-call.8} parent=0
    #allocation0 [shape = 'u8[8192]{0}', space=vmem, size = 0x2000, scoped, tag = 'operand span for operand 0']
    #allocation1 [shape = 'u8[8192]{0}', space=vmem, size = 0x2000, scoped, tag = 'operand span for operand 1']
    %p3 = scmp.gt.s32.totalorder 16, 0
    // Predicated region
    $region2: #{custom-call.8} parent=1 // pred_check
      %p4 = pneg %p3
    $region3: #{custom-call.8} parent=1 // pred_check_branch
      %6 = sbr.rel (%p4) target = $region5
    $region4: #{custom-call.8} parent=1 // pred_region
      %s7 = sshra.s32 16, 3
      %p8 = scmp.gt.s32.totalorder %s7, 0
      // Predicated region
      $region6: #{custom-call.8} parent=4 // pred_check
        %p9 = pneg %p8
      $region7: #{custom-call.8} parent=4 // pred_check_branch
        %11 = sbr.rel (%p9) target = $region9
      $region8: #{custom-call.8} parent=4 // pred_region
        %s12 = ssub.s32 %s7, 1
        %s13 = smul.u32 %s12, 128
        %s14 = sshra.s32 %s13, 4
        %s15 = scalar_lea.vmem %s0, %s14
        %v16 = vld [vmem:[%s0] sm:$0xff]
        // While loop
        $region10: #{custom-call.8} parent=8 // loop_pre_header
          _
        $region11: #{custom-call.8} parent=8 // loop_header
          %s17 = sphi %s0, %s39
          %s18 = sphi [#allocation0], %s40
          %v19 = vphi %v16, %v41
          %s20 = ssub.s32 %s15, 64
          %p21 = scmp.gt.s32.totalorder %s17, %s20
        $region12: #{custom-call.8} parent=8 // loop_header_branch
          %23 = sbr.rel (%p21) target = $region16
        $region13: #{custom-call.8} parent=8 // loop_body
          %24 = vst [vmem:[%s18] sm:$0xff] %v19
          %v25 = vld [vmem:[%s17 + $0x8] sm:$0xff]
          %26 = vst [vmem:[%s18 + $0x8] sm:$0xff] %v25
          %v27 = vld [vmem:[%s17 + $0x10] sm:$0xff]
          %28 = vst [vmem:[%s18 + $0x10] sm:$0xff] %v27
          %v29 = vld [vmem:[%s17 + $0x18] sm:$0xff]
          %30 = vst [vmem:[%s18 + $0x18] sm:$0xff] %v29
          %v31 = vld [vmem:[%s17 + $0x20] sm:$0xff]
          %32 = vst [vmem:[%s18 + $0x20] sm:$0xff] %v31
          %v33 = vld [vmem:[%s17 + $0x28] sm:$0xff]
          %34 = vst [vmem:[%s18 + $0x28] sm:$0xff] %v33
          %v35 = vld [vmem:[%s17 + $0x30] sm:$0xff]
          %36 = vst [vmem:[%s18 + $0x30] sm:$0xff] %v35
          %v37 = vld [vmem:[%s17 + $0x38] sm:$0xff]
          %38 = vst [vmem:[%s18 + $0x38] sm:$0xff] %v37
        $region14: #{custom-call.8} parent=8 // loop_footer
          %s39 = scalar_lea.vmem %s17, 64
          %s40 = scalar_lea.vmem %s18, 64
          %v41 = vld [vmem:[%s17 + $0x40] sm:$0xff]
        $region15: #{custom-call.8} parent=8 // loop_footer_branch
          %42 = sbr.rel target = $region11
        $region16: #{custom-call.8} parent=8 // loop_exit
          _
        // While loop
        $region17: #{custom-call.8} parent=8 // loop_pre_header
          _
        $region18: #{custom-call.8} parent=8 // loop_header
          %s43 = sphi %s17, %s51
          %s44 = sphi %s18, %s52
          %v45 = vphi %v19, %v45
          %p46 = scmp.gt.s32.totalorder %s43, %s15
        $region19: #{custom-call.8} parent=8 // loop_header_branch
          %48 = sbr.rel (%p46) target = $region23
        $region20: #{custom-call.8} parent=8 // loop_body
          %v49 = vld [vmem:[%s43] sm:$0xff]
          %50 = vst [vmem:[%s44] sm:$0xff] %v49
        $region21: #{custom-call.8} parent=8 // loop_footer
          %s51 = scalar_lea.vmem %s43, 8
          %s52 = scalar_lea.vmem %s44, 8
        $region22: #{custom-call.8} parent=8 // loop_footer_branch
          %53 = sbr.rel target = $region18
        $region23: #{custom-call.8} parent=8 // loop_exit
          _
      $region9: #{custom-call.8} parent=4 // pred_fallthru
        _
      %s54 = sand.u32 16, 7
      %s55 = sshllo.u32 0, %s54
      %s56 = smul.u32 %s7, 128
      %s57 = sshra.s32 %s56, 4
      %s58 = scalar_lea.vmem [#allocation0], %s57
      %s59 = smul.u32 %s7, 128
      %s60 = sshra.s32 %s59, 4
      %s61 = scalar_lea.vmem %s0, %s60
      %v62 = vld [vmem:[%s61] sm:%s55]
      %63 = vst [vmem:[%s58] sm:%s55] %v62
    $region5: #{custom-call.8} parent=1 // pred_fallthru
      _
    %v64 = vlaneseq
    %v65 = vand.u32 %v64, 127
    %v66 = vlaneseq
    %v67 = vshrl.u32 %v66, 7
    %vm69 = vcmp.eq.s32.totalorder %v65, %v67
    %v70 = vld [vmem:[#allocation0] sm:$0xff]
    %v71 = vlaneseq
    %v72 = vand.u32 %v71, 127
    %vm73 = vcmp.eq.s32.totalorder %v72, 0
    %v74 = vsel %vm73, %v70, 1.0
    %v75 = vsel %vm69, %v74, 0.0
    %v76 = vlaneseq
    %v77 = vand.u32 %v76, 127
    %v78 = vlaneseq
    %v79 = vshrl.u32 %v78, 7
    %v80 = vadd.s32 %v79, 8
    %vm81 = vcmp.eq.s32.totalorder %v77, %v80
    %v82 = vsel %vm81, 1.0, 0.0
    %s83 = scalar_lea.vmem [#allocation0], 1
    %v84 = vld [vmem:[%s83] ss:$0 sm:$0xff]
    %vm85 = vcmask 130048
    %v86 = vsel %vm85, %v84, 0.0
    %v87 = vlaneseq
    %v88 = vand.u32 %v87, 127
    %vm89 = vcmp.eq.s32.totalorder %v88, 1
    %v90 = vmul.f32 %v86, %v75
    %91 = vadd.xlane.f32.xlu0 %v90
    %v92 = vpop.xlane.xlu0 %91
    %v93 = vsel %vm89, %v92, %v75
    %s94 = scalar_lea.vmem [#allocation0], 2
    %v95 = vld [vmem:[%s94] ss:$0 sm:$0xff]
    %vm96 = vcmask 130048
    %v97 = vsel %vm96, %v95, 0.0
    %v98 = vlaneseq
    %v99 = vand.u32 %v98, 127
    %vm100 = vcmp.eq.s32.totalorder %v99, 2
    %v101 = vmul.f32 %v97, %v93
    %102 = vadd.xlane.f32.xlu0 %v101
    %v103 = vpop.xlane.xlu0 %102
    %v104 = vsel %vm100, %v103, %v93
    %s105 = scalar_lea.vmem [#allocation0], 3
    %v106 = vld [vmem:[%s105] ss:$0 sm:$0xff]
    %vm107 = vcmask 130048
    %v108 = vsel %vm107, %v106, 0.0
    %v109 = vlaneseq
    %v110 = vand.u32 %v109, 127
    %vm111 = vcmp.eq.s32.totalorder %v110, 3
    %v112 = vmul.f32 %v108, %v104
    %113 = vadd.xlane.f32.xlu0 %v112
    %v114 = vpop.xlane.xlu0 %113
    %v115 = vsel %vm111, %v114, %v104
    %s116 = scalar_lea.vmem [#allocation0], 4
    %v117 = vld [vmem:[%s116] ss:$0 sm:$0xff]
    %vm118 = vcmask 130048
    %v119 = vsel %vm118, %v117, 0.0
    %v120 = vlaneseq
    %v121 = vand.u32 %v120, 127
    %vm122 = vcmp.eq.s32.totalorder %v121, 4
    %v123 = vmul.f32 %v119, %v115
    %124 = vadd.xlane.f32.xlu0 %v123
    %v125 = vpop.xlane.xlu0 %124
    %v126 = vsel %vm122, %v125, %v115
    %s127 = scalar_lea.vmem [#allocation0], 5
    %v128 = vld [vmem:[%s127] ss:$0 sm:$0xff]
    %vm129 = vcmask 130048
    %v130 = vsel %vm129, %v128, 0.0
    %v131 = vlaneseq
    %v132 = vand.u32 %v131, 127
    %vm133 = vcmp.eq.s32.totalorder %v132, 5
    %v134 = vmul.f32 %v130, %v126
    %135 = vadd.xlane.f32.xlu0 %v134
    %v136 = vpop.xlane.xlu0 %135
    %v137 = vsel %vm133, %v136, %v126
    %s138 = scalar_lea.vmem [#allocation0], 6
    %v139 = vld [vmem:[%s138] ss:$0 sm:$0xff]
    %vm140 = vcmask 130048
    %v141 = vsel %vm140, %v139, 0.0
    %v142 = vlaneseq
    %v143 = vand.u32 %v142, 127
    %vm144 = vcmp.eq.s32.totalorder %v143, 6
    %v145 = vmul.f32 %v141, %v137
    %146 = vadd.xlane.f32.xlu0 %v145
    %v147 = vpop.xlane.xlu0 %146
    %v148 = vsel %vm144, %v147, %v137
    %s149 = scalar_lea.vmem [#allocation0], 7
    %v150 = vld [vmem:[%s149] ss:$0 sm:$0xff]
    %vm151 = vcmask 130048
    %v152 = vsel %vm151, %v150, 0.0
    %v153 = vlaneseq
    %v154 = vand.u32 %v153, 127
    %vm155 = vcmp.eq.s32.totalorder %v154, 7
    %v156 = vmul.f32 %v152, %v148
    %157 = vadd.xlane.f32.xlu0 %v156
    %v158 = vpop.xlane.xlu0 %157
    %v159 = vsel %vm155, %v158, %v148
    %s160 = scalar_lea.vmem [#allocation0], 8
    %v161 = vld [vmem:[%s160] ss:$0 sm:$0xff]
    %vm162 = vcmask 130048
    %v163 = vsel %vm162, %v161, 0.0
    %v164 = vlaneseq
    %v165 = vand.u32 %v164, 127
    %vm166 = vcmp.eq.s32.totalorder %v165, 8
    %v167 = vmul.f32 %v163, %v159
    %168 = vadd.xlane.f32.xlu0 %v167
    %v169 = vpop.xlane.xlu0 %168
    %v170 = vsel %vm166, %v169, %v159
    %v171 = vmul.f32 %v163, %v82
    %172 = vadd.xlane.f32.xlu0 %v171
    %v173 = vpop.xlane.xlu0 %172
    %v174 = vsel %vm166, %v173, %v82
    %s175 = scalar_lea.vmem [#allocation0], 9
    %v176 = vld [vmem:[%s175] ss:$0 sm:$0xff]
    %vm177 = vcmask 130048
    %v178 = vsel %vm177, %v176, 0.0
    %v179 = vlaneseq
    %v180 = vand.u32 %v179, 127
    %vm181 = vcmp.eq.s32.totalorder %v180, 9
    %v182 = vmul.f32 %v178, %v170
    %183 = vadd.xlane.f32.xlu0 %v182
    %v184 = vpop.xlane.xlu0 %183
    %v185 = vsel %vm181, %v184, %v170
    %v186 = vmul.f32 %v178, %v174
    %187 = vadd.xlane.f32.xlu0 %v186
    %v188 = vpop.xlane.xlu0 %187
    %v189 = vsel %vm181, %v188, %v174
    %s190 = scalar_lea.vmem [#allocation0], 10
    %v191 = vld [vmem:[%s190] ss:$0 sm:$0xff]
    %vm192 = vcmask 130048
    %v193 = vsel %vm192, %v191, 0.0
    %v194 = vlaneseq
    %v195 = vand.u32 %v194, 127
    %vm196 = vcmp.eq.s32.totalorder %v195, 10
    %v197 = vmul.f32 %v193, %v185
    %198 = vadd.xlane.f32.xlu0 %v197
    %v199 = vpop.xlane.xlu0 %198
    %v200 = vsel %vm196, %v199, %v185
    %v201 = vmul.f32 %v193, %v189
    %202 = vadd.xlane.f32.xlu0 %v201
    %v203 = vpop.xlane.xlu0 %202
    %v204 = vsel %vm196, %v203, %v189
    %s205 = scalar_lea.vmem [#allocation0], 11
    %v206 = vld [vmem:[%s205] ss:$0 sm:$0xff]
    %vm207 = vcmask 130048
    %v208 = vsel %vm207, %v206, 0.0
    %v209 = vlaneseq
    %v210 = vand.u32 %v209, 127
    %vm211 = vcmp.eq.s32.totalorder %v210, 11
    %v212 = vmul.f32 %v208, %v200
    %213 = vadd.xlane.f32.xlu0 %v212
    %v214 = vpop.xlane.xlu0 %213
    %v215 = vsel %vm211, %v214, %v200
    %v216 = vmul.f32 %v208, %v204
    %217 = vadd.xlane.f32.xlu0 %v216
    %v218 = vpop.xlane.xlu0 %217
    %v219 = vsel %vm211, %v218, %v204
    %s220 = scalar_lea.vmem [#allocation0], 12
    %v221 = vld [vmem:[%s220] ss:$0 sm:$0xff]
    %vm222 = vcmask 130048
    %v223 = vsel %vm222, %v221, 0.0
    %v224 = vlaneseq
    %v225 = vand.u32 %v224, 127
    %vm226 = vcmp.eq.s32.totalorder %v225, 12
    %v227 = vmul.f32 %v223, %v215
    %228 = vadd.xlane.f32.xlu0 %v227
    %v229 = vpop.xlane.xlu0 %228
    %v230 = vsel %vm226, %v229, %v215
    %v231 = vmul.f32 %v223, %v219
    %232 = vadd.xlane.f32.xlu0 %v231
    %v233 = vpop.xlane.xlu0 %232
    %v234 = vsel %vm226, %v233, %v219
    %s235 = scalar_lea.vmem [#allocation0], 13
    %v236 = vld [vmem:[%s235] ss:$0 sm:$0xff]
    %vm237 = vcmask 130048
    %v238 = vsel %vm237, %v236, 0.0
    %v239 = vlaneseq
    %v240 = vand.u32 %v239, 127
    %vm241 = vcmp.eq.s32.totalorder %v240, 13
    %v242 = vmul.f32 %v238, %v230
    %243 = vadd.xlane.f32.xlu0 %v242
    %v244 = vpop.xlane.xlu0 %243
    %v245 = vsel %vm241, %v244, %v230
    %v246 = vmul.f32 %v238, %v234
    %247 = vadd.xlane.f32.xlu0 %v246
    %v248 = vpop.xlane.xlu0 %247
    %v249 = vsel %vm241, %v248, %v234
    %s250 = scalar_lea.vmem [#allocation0], 14
    %v251 = vld [vmem:[%s250] ss:$0 sm:$0xff]
    %vm252 = vcmask 130048
    %v253 = vsel %vm252, %v251, 0.0
    %v254 = vlaneseq
    %v255 = vand.u32 %v254, 127
    %vm256 = vcmp.eq.s32.totalorder %v255, 14
    %v257 = vmul.f32 %v253, %v245
    %258 = vadd.xlane.f32.xlu0 %v257
    %v259 = vpop.xlane.xlu0 %258
    %v260 = vsel %vm256, %v259, %v245
    %v261 = vmul.f32 %v253, %v249
    %262 = vadd.xlane.f32.xlu0 %v261
    %v263 = vpop.xlane.xlu0 %262
    %v264 = vsel %vm256, %v263, %v249
    %s265 = scalar_lea.vmem [#allocation0], 15
    %v266 = vld [vmem:[%s265] ss:$0 sm:$0xff]
    %vm267 = vcmask 130048
    %v268 = vsel %vm267, %v266, 0.0
    %v269 = vlaneseq
    %v270 = vand.u32 %v269, 127
    %vm271 = vcmp.eq.s32.totalorder %v270, 15
    %v272 = vmul.f32 %v268, %v260
    %273 = vadd.xlane.f32.xlu0 %v272
    %v274 = vpop.xlane.xlu0 %273
    %v275 = vsel %vm271, %v274, %v260
    %v276 = vmul.f32 %v268, %v264
    %277 = vadd.xlane.f32.xlu0 %v276
    %v278 = vpop.xlane.xlu0 %277
    %v279 = vsel %vm271, %v278, %v264
    %280 = vst [vmem:[#allocation1] sm:$0xff] %v275
    %s281 = scalar_lea.vmem [#allocation1], 8
    %282 = vst [vmem:[%s281] sm:$0xff] %v279
    %p284 = scmp.gt.s32.totalorder 16, 0
    // Predicated region
    $region24: #{custom-call.8} parent=1 // pred_check
      %p285 = pneg %p284
    $region25: #{custom-call.8} parent=1 // pred_check_branch
      %287 = sbr.rel (%p285) target = $region27
    $region26: #{custom-call.8} parent=1 // pred_region
      %s288 = sshra.s32 16, 3
      %p289 = scmp.gt.s32.totalorder %s288, 0
      // Predicated region
      $region28: #{custom-call.8} parent=26 // pred_check
        %p290 = pneg %p289
      $region29: #{custom-call.8} parent=26 // pred_check_branch
        %292 = sbr.rel (%p290) target = $region31
      $region30: #{custom-call.8} parent=26 // pred_region
        %s293 = ssub.s32 %s288, 1
        %s294 = smul.u32 %s293, 128
        %s295 = sshra.s32 %s294, 4
        %s296 = scalar_lea.vmem [#allocation1], %s295
        %v297 = vld [vmem:[#allocation1] sm:$0xff]
        // While loop
        $region32: #{custom-call.8} parent=30 // loop_pre_header
          _
        $region33: #{custom-call.8} parent=30 // loop_header
          %s298 = sphi [#allocation1], %s320
          %s299 = sphi %s1, %s321
          %v300 = vphi %v297, %v322
          %s301 = ssub.s32 %s296, 64
          %p302 = scmp.gt.s32.totalorder %s298, %s301
        $region34: #{custom-call.8} parent=30 // loop_header_branch
          %304 = sbr.rel (%p302) target = $region38
        $region35: #{custom-call.8} parent=30 // loop_body
          %305 = vst [vmem:[%s299] sm:$0xff] %v300
          %v306 = vld [vmem:[%s298 + $0x8] sm:$0xff]
          %307 = vst [vmem:[%s299 + $0x8] sm:$0xff] %v306
          %v308 = vld [vmem:[%s298 + $0x10] sm:$0xff]
          %309 = vst [vmem:[%s299 + $0x10] sm:$0xff] %v308
          %v310 = vld [vmem:[%s298 + $0x18] sm:$0xff]
          %311 = vst [vmem:[%s299 + $0x18] sm:$0xff] %v310
          %v312 = vld [vmem:[%s298 + $0x20] sm:$0xff]
          %313 = vst [vmem:[%s299 + $0x20] sm:$0xff] %v312
          %v314 = vld [vmem:[%s298 + $0x28] sm:$0xff]
          %315 = vst [vmem:[%s299 + $0x28] sm:$0xff] %v314
          %v316 = vld [vmem:[%s298 + $0x30] sm:$0xff]
          %317 = vst [vmem:[%s299 + $0x30] sm:$0xff] %v316
          %v318 = vld [vmem:[%s298 + $0x38] sm:$0xff]
          %319 = vst [vmem:[%s299 + $0x38] sm:$0xff] %v318
        $region36: #{custom-call.8} parent=30 // loop_footer
          %s320 = scalar_lea.vmem %s298, 64
          %s321 = scalar_lea.vmem %s299, 64
          %v322 = vld [vmem:[%s298 + $0x40] sm:$0xff]
        $region37: #{custom-call.8} parent=30 // loop_footer_branch
          %323 = sbr.rel target = $region33
        $region38: #{custom-call.8} parent=30 // loop_exit
          _
        // While loop
        $region39: #{custom-call.8} parent=30 // loop_pre_header
          _
        $region40: #{custom-call.8} parent=30 // loop_header
          %s324 = sphi %s298, %s332
          %s325 = sphi %s299, %s333
          %v326 = vphi %v300, %v326
          %p327 = scmp.gt.s32.totalorder %s324, %s296
        $region41: #{custom-call.8} parent=30 // loop_header_branch
          %329 = sbr.rel (%p327) target = $region45
        $region42: #{custom-call.8} parent=30 // loop_body
          %v330 = vld [vmem:[%s324] sm:$0xff]
          %331 = vst [vmem:[%s325] sm:$0xff] %v330
        $region43: #{custom-call.8} parent=30 // loop_footer
          %s332 = scalar_lea.vmem %s324, 8
          %s333 = scalar_lea.vmem %s325, 8
        $region44: #{custom-call.8} parent=30 // loop_footer_branch
          %334 = sbr.rel target = $region40
        $region45: #{custom-call.8} parent=30 // loop_exit
          _
      $region31: #{custom-call.8} parent=26 // pred_fallthru
        _
      %s335 = sand.u32 16, 7
      %s336 = sshllo.u32 0, %s335
      %s337 = smul.u32 %s288, 128
      %s338 = sshra.s32 %s337, 4
      %s339 = scalar_lea.vmem %s1, %s338
      %s340 = smul.u32 %s288, 128
      %s341 = sshra.s32 %s340, 4
      %s342 = scalar_lea.vmem [#allocation1], %s341
      %v343 = vld [vmem:[%s342] sm:%s336]
      %344 = vst [vmem:[%s339] sm:%s336] %v343
    $region27: #{custom-call.8} parent=1 // pred_fallthru
      _

// kernel: frmap_forward.1
$region0: #{frmap_forward.1}
  #allocation0 [shape = 'u32[]', space=smem, size = 0x4, offset = 0x4, fixed_abs, tag = 'smem constant byte address 0x4 - core index']
  #allocation1 [shape = 'u32[144,128]{1,0:T(1,128)}', space=vmem, size = 0x12000, scoped, tag = 'internal scratch']
  #allocation2 [shape = 'f32[16,128]{1,0:T(8,128)}', space=vmem, size = 0x2000, scoped, tag = 'scratch operand']
  %s0 = inlined_call_operand.vmem [shape: f32[16,128], index: 0, kind: input, shape index: {}]
  %s1 = inlined_call_operand.vmem [shape: f32[128,128], index: 1, kind: input, shape index: {}]
  %s2 = inlined_call_operand.vmem [shape: f32[16,128], index: 2, kind: output, shape index: {}]
  %s3 = sld [smem:[#allocation0]]
  $region26: #{frmap_forward.1} parent=0
    _
  %s5 = ssub.s32 1, %s3
  %s6 = scalar_select 0, %s5, %s3
  // Predicated region
  $region2: #{frmap_forward.1} parent=0 // pred_check
    _
  $region3: #{frmap_forward.1} parent=0 // pred_check_branch
    %8 = sbr.rel (0) target = $region5
  $region4: #{frmap_forward.1} parent=0 // pred_region
    _
  $region5: #{frmap_forward.1} parent=0 // pred_fallthru
    _
  // Predicated region
  $region6: #{frmap_forward.1} parent=0 // pred_check
    _
  $region7: #{frmap_forward.1} parent=0 // pred_check_branch
    %10 = sbr.rel (0) target = $region9
  $region8: #{frmap_forward.1} parent=0 // pred_region
    _
  $region9: #{frmap_forward.1} parent=0 // pred_fallthru
    _
  %p11 = scmp.eq.s32.totalorder 0, 0
  // Predicated region
  $region10: #{frmap_forward.1} parent=0 // pred_check
    %p12 = pneg %p11
  $region11: #{frmap_forward.1} parent=0 // pred_check_branch
    %14 = sbr.rel (%p12) target = $region13
  $region12: #{frmap_forward.1} parent=0 // pred_region
    %15 = vst [vmem:[#allocation2] sm:$0xff] 0.0
    %16 = vst [vmem:[#allocation2 + $0x8] sm:$0xff] 0.0
  $region13: #{frmap_forward.1} parent=0 // pred_fallthru
    _
  %v17 = vld [vmem:[#allocation2] sm:$0xff]
  %v18 = vld [vmem:[#allocation2 + $0x8] sm:$0xff]
  %v19 = vld [vmem:[%s0] sm:$0xff]
  %v20 = vld [vmem:[%s0 + $0x8] sm:$0xff]
  %v21 = vld [vmem:[%s1] sm:$0xff]
  %v22 = vld [vmem:[%s1 + $0x8] sm:$0xff]
  %v23 = vld [vmem:[%s1 + $0x10] sm:$0xff]
  %v24 = vld [vmem:[%s1 + $0x18] sm:$0xff]
  %v25 = vld [vmem:[%s1 + $0x20] sm:$0xff]
  %v26 = vld [vmem:[%s1 + $0x28] sm:$0xff]
  %v27 = vld [vmem:[%s1 + $0x30] sm:$0xff]
  %v28 = vld [vmem:[%s1 + $0x38] sm:$0xff]
  %v29 = vld [vmem:[%s1 + $0x40] sm:$0xff]
  %v30 = vld [vmem:[%s1 + $0x48] sm:$0xff]
  %v31 = vld [vmem:[%s1 + $0x50] sm:$0xff]
  %v32 = vld [vmem:[%s1 + $0x58] sm:$0xff]
  %v33 = vld [vmem:[%s1 + $0x60] sm:$0xff]
  %v34 = vld [vmem:[%s1 + $0x68] sm:$0xff]
  %v35 = vld [vmem:[%s1 + $0x70] sm:$0xff]
  %v36 = vld [vmem:[%s1 + $0x78] sm:$0xff]
  %37 = vmatprep.subr.mxu0 0.0
  %38 = vmatpush1.msra.mxu0 %v21
  %39 = vmatprep.subr.mxu0 0.0
  %40 = vmatpush1.msra.mxu0 %v22
  %41 = vmatprep.subr.mxu0 0.0
  %42 = vmatpush1.msra.mxu0 %v23
  %43 = vmatprep.subr.mxu0 0.0
  %44 = vmatpush1.msra.mxu0 %v24
  %45 = vmatprep.subr.mxu0 0.0
  %46 = vmatpush1.msra.mxu0 %v25
  %47 = vmatprep.subr.mxu0 0.0
  %48 = vmatpush1.msra.mxu0 %v26
  %49 = vmatprep.subr.mxu0 0.0
  %50 = vmatpush1.msra.mxu0 %v27
  %51 = vmatprep.subr.mxu0 0.0
  %52 = vmatpush1.msra.mxu0 %v28
  %53 = vmatprep.subr.mxu0 0.0
  %54 = vmatpush1.msra.mxu0 %v29
  %55 = vmatprep.subr.mxu0 0.0
  %56 = vmatpush1.msra.mxu0 %v30
  %57 = vmatprep.subr.mxu0 0.0
  %58 = vmatpush1.msra.mxu0 %v31
  %59 = vmatprep.subr.mxu0 0.0
  %60 = vmatpush1.msra.mxu0 %v32
  %61 = vmatprep.subr.mxu0 0.0
  %62 = vmatpush1.msra.mxu0 %v33
  %63 = vmatprep.subr.mxu0 0.0
  %64 = vmatpush1.msra.mxu0 %v34
  %65 = vmatprep.subr.mxu0 0.0
  %66 = vmatpush1.msra.mxu0 %v35
  %67 = vmatprep.subr.mxu0 0.0
  %68 = vmatpush1.msra.mxu0 %v36
  %69 = vmatprep.subr.mxu0 0.0
  %70 = vmatpush1.msra.mxu0 0.0
  %71 = vmatprep.subr.mxu0 0.0
  %72 = vmatpush1.msra.mxu0 0.0
  %73 = vmatprep.subr.mxu0 0.0
  %74 = vmatpush1.msra.mxu0 0.0
  %75 = vmatprep.subr.mxu0 0.0
  %76 = vmatpush1.msra.mxu0 0.0
  %77 = vmatprep.subr.mxu0 0.0
  %78 = vmatpush1.msra.mxu0 0.0
  %79 = vmatprep.subr.mxu0 0.0
  %80 = vmatpush1.msra.mxu0 0.0
  %81 = vmatprep.subr.mxu0 0.0
  %82 = vmatpush1.msra.mxu0 0.0
  %83 = vmatprep.subr.mxu0 0.0
  %84 = vmatpush1.msra.mxu0 0.0
  %85 = vmatprep.subr.mxu0 0.0
  %86 = vmatpush1.msra.mxu0 0.0
  %87 = vmatprep.subr.mxu0 0.0
  %88 = vmatpush1.msra.mxu0 0.0
  %89 = vmatprep.subr.mxu0 0.0
  %90 = vmatpush1.msra.mxu0 0.0
  %91 = vmatprep.subr.mxu0 0.0
  %92 = vmatpush1.msra.mxu0 0.0
  %93 = vmatprep.subr.mxu0 0.0
  %94 = vmatpush1.msra.mxu0 0.0
  %95 = vmatprep.subr.mxu0 0.0
  %96 = vmatpush1.msra.mxu0 0.0
  %97 = vmatprep.subr.mxu0 0.0
  %98 = vmatpush1.msra.mxu0 0.0
  %99 = vmatprep.subr.mxu0 0.0
  %100 = vmatpush1.msra.mxu0 0.0
  %101 = vmatprep.mubr.f32.mxu0 0.0
  %102 = vmatmul.mubr.f32.gmra.mrb[0].mxu0 %v19
  %v103 = vpop.f32.mrb[0].mxu0
  %v104 = vadd.f32 0.0, %v103
  %v105 = vpop.f32.mrb[0].mxu0
  %106 = vmatprep.mubr.f32.mxu0 0.0
  %107 = vmatmul.mubr.f32.gmra.mrb[0].mxu0 %v20
  %v108 = vpop.f32.mrb[0].mxu0
  %v109 = vadd.f32 0.0, %v108
  %v110 = vpop.f32.mrb[0].mxu0
  %111 = vdwg.mxu0
  %v112 = vadd.f32 %v17, %v104
  %v113 = vadd.f32 %v18, %v109
  %114 = vst [vmem:[#allocation2] sm:$0xff] %v112
  %115 = vst [vmem:[#allocation2 + $0x8] sm:$0xff] %v113
  // Predicated region
  $region14: #{frmap_forward.1} parent=0 // pred_check
    %p116 = pneg %p11
  $region15: #{frmap_forward.1} parent=0 // pred_check_branch
    %118 = sbr.rel (%p116) target = $region17
  $region16: #{frmap_forward.1} parent=0 // pred_region
    %v119 = vld [vmem:[#allocation2] sm:$0xff]
    %v120 = vld [vmem:[#allocation2 + $0x8] sm:$0xff]
    %121 = vst [vmem:[%s2] sm:$0xff] %v119
    %122 = vst [vmem:[%s2 + $0x8] sm:$0xff] %v120
  $region17: #{frmap_forward.1} parent=0 // pred_fallthru
    _
  // Predicated region
  $region18: #{frmap_forward.1} parent=0 // pred_check
    _
  $region19: #{frmap_forward.1} parent=0 // pred_check_branch
    %124 = sbr.rel (0) target = $region21
  $region20: #{frmap_forward.1} parent=0 // pred_region
    _
  $region21: #{frmap_forward.1} parent=0 // pred_fallthru
    _
  // Predicated region
  $region22: #{frmap_forward.1} parent=0 // pred_check
    _
  $region23: #{frmap_forward.1} parent=0 // pred_check_branch
    %126 = sbr.rel (0) target = $region25
  $region24: #{frmap_forward.1} parent=0 // pred_region
    _
  $region25: #{frmap_forward.1} parent=0 // pred_fallthru
    _

</llo_original>
